<compile_context>
chip_gen: v6e
topology: v6e:2x2x1
jax: 0.10.0
libtpu: 0.0.40
codegen_flags: <defaults>
</compile_context>

<pallas_src>
import math

import jax
import jax.numpy as jnp
from jax.experimental import pallas as pl
from jax.experimental.pallas import tpu as pltpu


def _pe_add_kernel_narrow(x_ref, pe_ref, o_ref):
    # x_ref / o_ref: (tS, B*D) lane-dense block; pe_ref: (tS, D) block.
    # D % 128 == 0 is guaranteed by the wrapper, so every slice below is a
    # zero-cost, 128-lane-aligned ref view (unmasked vld/vst).
    D = pe_ref.shape[1]
    B = x_ref.shape[1] // D
    pe = pe_ref[...]
    for b in range(B):                         # B is small & static -> unrolled
        lo, hi = b * D, (b + 1) * D
        o_ref[:, lo:hi] = x_ref[:, lo:hi] + pe


def _pe_add_kernel_full(x_ref, pe_ref, o_ref):
    # Fallback path (D not lane-aligned): pe already broadcast to (tS, B*D).
    o_ref[...] = x_ref[...] + pe_ref[...]


def make_positional_encoding_table(d_model, max_len=5000, dtype=jnp.float32):
    """Deterministic sinusoidal table, identical math to the PyTorch __init__.

    Build this ONCE in the model dtype so the forward path never re-casts it.
    """
    # PyTorch's pe[:, 1::2] assignment also requires even d_model.
    assert d_model % 2 == 0, "d_model must be even (same constraint as the PyTorch module)"
    position = jnp.arange(0, max_len, dtype=jnp.float32)[:, None]            # (L, 1)
    div_term = jnp.exp(
        jnp.arange(0, d_model, 2, dtype=jnp.float32)
        * (-math.log(10000.0) / d_model)
    )                                                                          # (D/2,)
    sin_part = jnp.sin(position * div_term)                                   # (L, D/2)
    cos_part = jnp.cos(position * div_term)                                   # (L, D/2)
    # interleave: pe[:, 0::2] = sin, pe[:, 1::2] = cos
    pe = jnp.stack([sin_part, cos_part], axis=-1).reshape(max_len, d_model)
    # match buffer shape: (max_len, 1, d_model)
    return pe[:, None, :].astype(dtype)


def _sublane_multiple(itemsize):
    # Native sublane packing: 8 rows for 4-byte, 16 for 2-byte, 32 for 1-byte.
    return max(8, 32 // max(itemsize, 1))


def _vmem_budget_bytes():
    """Generation-aware double-buffered tile budget (query VMEM capacity)."""
    try:
        info = pltpu.get_tpu_info()
        vmem_cap = getattr(info, "vmem_capacity_bytes", 64 * 1024 * 1024)
    except Exception:
        vmem_cap = 64 * 1024 * 1024
    if vmem_cap >= 100 * 1024 * 1024:        # v5e / v6e: 128 MiB physical VMEM
        return 24 * 1024 * 1024
    return 16 * 1024 * 1024                   # v7x: 64 MiB physical VMEM


def _choose_seq_tile(S, row_elems, pe_row_elems, itemsize):
    """Seq tile: biggest sublane-aligned tile under the budget, but ALWAYS
    keeping >= ~4 grid steps so the pipeline can overlap and v7x uses both TCs.
    """
    m = _sublane_multiple(itemsize)
    if S <= m:
        return S                              # tiny sequence: single block is unavoidable

    budget = _vmem_budget_bytes()
    per_row = 2 * (2 * row_elems + pe_row_elems) * itemsize   # double-buffered x+out+pe
    t = max(budget // max(per_row, 1), 1)
    t = max((t // m) * m, m)

    # Never take the single-block path: cap at round-up(cdiv(S, 4)) to a
    # sublane multiple -> >= ~4 grid steps (multiple-of-4 step count on v7x).
    min_steps = 4
    t_cap = ((((S + min_steps - 1) // min_steps) + m - 1) // m) * m
    t = min(t, t_cap)
    t = max(min(t, S), m)
    return t


def positional_encoding(x, pe, *, seq_tile=None):
    """x: [S, B, D]; pe: [max_len, 1, D]. Returns x + pe[:S] (eval-mode dropout).

    Note: the lane-axis replication of pe relies on x being a contiguous,
    row-major [S, B, D]; a transposed input would force a copy at the reshape
    (perf only, numerics unaffected).
    """
    S, B, D = x.shape
    pe_slice = pe[:S, 0, :]                      # (S, D) — plain-JAX glue
    if pe_slice.dtype != x.dtype:                # no-op when the table was built in model dtype
        pe_slice = pe_slice.astype(x.dtype)
    x2 = x.reshape(S, B * D)                     # row-major flatten: lane-dense rows

    itemsize = jnp.dtype(x.dtype).itemsize
    lane_aligned = (D % 128 == 0)
    if lane_aligned:
        kernel = _pe_add_kernel_narrow
        pe_in = pe_slice                         # narrow (S, D): 1/B of the broadcast bytes
        pe_cols = D
    else:
        # Un-aligned D would turn in-kernel replication into XLU shuffles and
        # masked stores; pre-broadcast once in the wrapper instead.
        kernel = _pe_add_kernel_full
        pe_in = jnp.broadcast_to(pe_slice[:, None, :], (S, B, D)).reshape(S, B * D)
        pe_cols = B * D

    tS = seq_tile if seq_tile is not None else _choose_seq_tile(S, B * D, pe_cols, itemsize)

    # Keep vmem_limit_bytes >= actual double-buffered footprint (wide-row safety).
    footprint = 2 * (2 * (B * D) + pe_cols) * itemsize * tS
    vmem_limit = max(32 * 1024 * 1024, int(footprint * 5 // 4))

    out2 = pl.pallas_call(
        kernel,
        out_shape=jax.ShapeDtypeStruct((S, B * D), x.dtype),
        grid_spec=pl.GridSpec(
            grid=(pl.cdiv(S, tS),),
            in_specs=[
                pl.BlockSpec((tS, B * D), lambda i: (i, 0)),     # x tile
                pl.BlockSpec((tS, pe_cols), lambda i: (i, 0)),   # pe tile
            ],
            out_specs=pl.BlockSpec((tS, B * D), lambda i: (i, 0)),
        ),
        compiler_params=pltpu.CompilerParams(
            dimension_semantics=("parallel",),   # independent seq tiles (v7x: 2 TCs)
            vmem_limit_bytes=vmem_limit,
        ),
    )(x2, pe_in)
    return out2.reshape(S, B, D)


if __name__ == "__main__":
    key = jax.random.PRNGKey(0)
    k0, k1, k2 = jax.random.split(key, 3)

    # Small demo shape from the module's forward: [seq, batch, d_model].
    # d_model=128 keeps the lane axis aligned (B*D = 256 lanes, fully dense).
    S, B, D = 8, 2, 128
    MAX_LEN = 128
    pe_f32 = make_positional_encoding_table(D, max_len=MAX_LEN, dtype=jnp.float32)

    x = jax.random.normal(k0, (S, B, D), dtype=jnp.float32)
    out = jax.block_until_ready(positional_encoding(x, pe_f32))
    ref = x + pe_f32[:S]
    assert out.shape == (S, B, D)
    assert jnp.allclose(out, ref, atol=1e-6), "mismatch vs reference (tiny-seq path)"

    # Larger sequence: auto tile selection -> >= 4 grid steps, pipelined.
    S2 = 64
    x_big = jax.random.normal(k1, (S2, B, D), dtype=jnp.float32)
    out_big = jax.block_until_ready(positional_encoding(x_big, pe_f32))
    ref_big = x_big + pe_f32[:S2]
    assert jnp.allclose(out_big, ref_big, atol=1e-6), "mismatch vs reference (auto-tiled path)"

    # Explicit seq_tile exercising the partial-last-tile path.
    out_big2 = jax.block_until_ready(positional_encoding(x_big, pe_f32, seq_tile=24))
    assert jnp.allclose(out_big2, ref_big, atol=1e-6), "mismatch vs reference (partial-tile path)"

    # bf16 activations with a bf16-built table (no per-call cast), sublane=16 rounding.
    pe_bf16 = make_positional_encoding_table(D, max_len=MAX_LEN, dtype=jnp.bfloat16)
    x_bf = jax.random.normal(k2, (S2, B, D), dtype=jnp.bfloat16)
    out_bf = jax.block_until_ready(positional_encoding(x_bf, pe_bf16))
    ref_bf = x_bf + pe_bf16[:S2]
    assert jnp.allclose(out_bf.astype(jnp.float32), ref_bf.astype(jnp.float32),
                        atol=1e-2), "mismatch vs reference (bf16 path)"

    print("KERNEL_OK")
</pallas_src>

<mosaic_0001>
module attributes {stable_mosaic.version = 11 : i64} {
  func.func @_pe_add_kernel_narrow(%arg0: i32, %arg1: memref<8x256xf32, #tpu.memory_space<vmem>>, %arg2: memref<8x128xf32, #tpu.memory_space<vmem>>, %arg3: memref<8x256xf32, #tpu.memory_space<vmem>>) attributes {dimension_semantics = [#tpu.dimension_semantics<parallel>], iteration_bounds = array<i64: 1>, scalar_prefetch = 0 : i64, scratch_operands = 0 : i64, tpu.core_type = #tpu.core_type<tc>, window_params = [{transform_indices = @transform_0, window_bounds = array<i64: 8, 256>}, {transform_indices = @transform_1, window_bounds = array<i64: 8, 128>}, {transform_indices = @transform_2, window_bounds = array<i64: 8, 256>}]} {
    %c0 = arith.constant 0 : index
    %c0_0 = arith.constant 0 : index
    %0 = vector.load %arg2[%c0, %c0_0] : memref<8x128xf32, #tpu.memory_space<vmem>>, vector<8x128xf32>
    %c0_1 = arith.constant 0 : index
    %c0_2 = arith.constant 0 : index
    %1 = vector.load %arg1[%c0_1, %c0_2] : memref<8x256xf32, #tpu.memory_space<vmem>>, vector<8x128xf32>
    %2 = arith.addf %1, %0 : vector<8x128xf32>
    %c0_3 = arith.constant 0 : index
    %c0_4 = arith.constant 0 : index
    %3 = vector.load %arg3[%c0_3, %c0_4] : memref<8x256xf32, #tpu.memory_space<vmem>>, vector<8x128xf32>
    tpu.vector_store %arg3[%c0_3, %c0_4], %2 {strides = array<i32>} : memref<8x256xf32, #tpu.memory_space<vmem>>, vector<8x128xf32>,
    %c0_5 = arith.constant 0 : index
    %c128 = arith.constant 128 : index
    %4 = vector.load %arg1[%c0_5, %c128] : memref<8x256xf32, #tpu.memory_space<vmem>>, vector<8x128xf32>
    %5 = arith.addf %4, %0 : vector<8x128xf32>
    %c0_6 = arith.constant 0 : index
    %c128_7 = arith.constant 128 : index
    %6 = vector.load %arg3[%c0_6, %c128_7] : memref<8x256xf32, #tpu.memory_space<vmem>>, vector<8x128xf32>
    tpu.vector_store %arg3[%c0_6, %c128_7], %5 {strides = array<i32>} : memref<8x256xf32, #tpu.memory_space<vmem>>, vector<8x128xf32>,
    return
  }
  func.func @transform_0(%arg0: i32) -> (i32, i32) {
    %c0_i32 = arith.constant 0 : i32
    %c0_i32_0 = arith.constant 0 : i32
    return %arg0, %c0_i32 : i32, i32
  }
  func.func @transform_1(%arg0: i32) -> (i32, i32) {
    %c0_i32 = arith.constant 0 : i32
    %c0_i32_0 = arith.constant 0 : i32
    return %arg0, %c0_i32 : i32, i32
  }
  func.func @transform_2(%arg0: i32) -> (i32, i32) {
    %c0_i32 = arith.constant 0 : i32
    %c0_i32_0 = arith.constant 0 : i32
    return %arg0, %c0_i32 : i32, i32
  }
}

</mosaic_0001>

<llo_original>
// kernel: tpu_custom_call.1
$region0: #{tpu_custom_call.1}
  #allocation0 [shape = 'u32[]', space=smem, size = 0x4, offset = 0x4, fixed_abs, tag = 'smem constant byte address 0x4 - core index']
  #allocation1 [shape = 'u32[144,128]{1,0:T(1,128)}', space=vmem, size = 0x12000, scoped, tag = 'internal scratch']
  %s0 = inlined_call_operand.hbm [shape: f32[8,256], index: 0, kind: input, shape index: {}]
  %s1 = inlined_call_operand.hbm [shape: f32[8,128], index: 1, kind: input, shape index: {}]
  %s2 = inlined_call_operand.hbm [shape: f32[8,256], index: 2, kind: output, shape index: {}]
  %s3 = sld [smem:[#allocation0]]
  $region26: #{tpu_custom_call.1} parent=0
    _
  %s5 = ssub.s32 1, %s3
  %s6 = scalar_select 0, %s5, %s3
  $region1: #{tpu_custom_call.1} parent=0
    #allocation2 [shape = 'u8[8192]{0}', space=vmem, size = 0x2000, scoped, tag = 'input window, operand 0, single buffered']
    #allocation3 [shape = 's32[1]{0}', space=sflag, size = 0x4, scoped, tag = 'scoped memory for tpu_custom_call.1']
    #allocation4 [shape = 's32[1]{0}', space=sflag, size = 0x4, scoped, tag = 'scoped memory for tpu_custom_call.1']
    #allocation5 [shape = 'u8[4096]{0}', space=vmem, size = 0x1000, scoped, tag = 'input window, operand 1, single buffered']
    #allocation6 [shape = 's32[1]{0}', space=sflag, size = 0x4, scoped, tag = 'scoped memory for tpu_custom_call.1']
    #allocation7 [shape = 'u8[8192]{0}', space=vmem, size = 0x2000, scoped, tag = 'output window, operand 0, single buffered']
    %7 = vsyncpa [#allocation3], 0
    %8 = vsyncpa [#allocation6], 0
    %9 = vsyncpa [#allocation4], 0
    // Predicated region
    $region2: #{tpu_custom_call.1} parent=1 // pred_check
      _
    $region3: #{tpu_custom_call.1} parent=1 // pred_check_branch
      %11 = sbr.rel (0) target = $region5
    $region4: #{tpu_custom_call.1} parent=1 // pred_region
      %s13 = ssub.s32 256, 256
      %14 = vsyncadd [#allocation3], %s13
      %s16 = sshll.u32 [#allocation2], 4
      %s17 = int_to_ptr.vmem [resolvable:$true] %s16
      %19 = dma.hbm_to_vmem [thread:$0]  %s0, 256, %s17, [#allocation3]
    $region5: #{tpu_custom_call.1} parent=1 // pred_fallthru
      _
    // Predicated region
    $region6: #{tpu_custom_call.1} parent=1 // pred_check
      _
    $region7: #{tpu_custom_call.1} parent=1 // pred_check_branch
      %21 = sbr.rel (0) target = $region9
    $region8: #{tpu_custom_call.1} parent=1 // pred_region
      %s23 = ssub.s32 128, 128
      %24 = vsyncadd [#allocation6], %s23
      %s26 = sshll.u32 [#allocation5], 4
      %s27 = int_to_ptr.vmem [resolvable:$true] %s26
      %29 = dma.hbm_to_vmem [thread:$0]  %s1, 128, %s27, [#allocation6]
    $region9: #{tpu_custom_call.1} parent=1 // pred_fallthru
      _
    // Predicated region
    $region10: #{tpu_custom_call.1} parent=1 // pred_check
      _
    $region11: #{tpu_custom_call.1} parent=1 // pred_check_branch
      %31 = sbr.rel (0) target = $region13
    $region12: #{tpu_custom_call.1} parent=1 // pred_region
      %32 = dma.done [#allocation3], 256
    $region13: #{tpu_custom_call.1} parent=1 // pred_fallthru
      _
    // Predicated region
    $region14: #{tpu_custom_call.1} parent=1 // pred_check
      _
    $region15: #{tpu_custom_call.1} parent=1 // pred_check_branch
      %34 = sbr.rel (0) target = $region17
    $region16: #{tpu_custom_call.1} parent=1 // pred_region
      %35 = dma.done [#allocation6], 128
    $region17: #{tpu_custom_call.1} parent=1 // pred_fallthru
      _
    %v36 = vld [vmem:[#allocation5] sm:$0xff]
    %v37 = vld [vmem:[#allocation2] sm:$0xff]
    %v38 = vadd.f32 %v37, %v36
    %39 = vst [vmem:[#allocation7] sm:$0xff] %v38
    %v40 = vld [vmem:[#allocation2 + $0x8] sm:$0xff]
    %v41 = vadd.f32 %v40, %v36
    %42 = vst [vmem:[#allocation7 + $0x8] sm:$0xff] %v41
    // Predicated region
    $region18: #{tpu_custom_call.1} parent=1 // pred_check
      _
    $region19: #{tpu_custom_call.1} parent=1 // pred_check_branch
      %44 = sbr.rel (0) target = $region21
    $region20: #{tpu_custom_call.1} parent=1 // pred_region
      %s46 = ssub.s32 256, 256
      %47 = vsyncadd [#allocation4], %s46
      %s49 = sshll.u32 [#allocation7], 4
      %s50 = int_to_ptr.vmem [resolvable:$true] %s49
      %52 = dma.vmem_to_hbm [thread:$0]  %s50, 256, %s2, [#allocation4]
    $region21: #{tpu_custom_call.1} parent=1 // pred_fallthru
      _
    // Predicated region
    $region22: #{tpu_custom_call.1} parent=1 // pred_check
      _
    $region23: #{tpu_custom_call.1} parent=1 // pred_check_branch
      %54 = sbr.rel (0) target = $region25
    $region24: #{tpu_custom_call.1} parent=1 // pred_region
      %55 = dma.done [#allocation4], 256
    $region25: #{tpu_custom_call.1} parent=1 // pred_fallthru
      _
    %56 = vsyncpa [#allocation3], 1
    %57 = vsyncpa [#allocation6], 1
    %58 = vsyncpa [#allocation4], 1

</llo_original>
